<compile_context>
chip_gen: v5e
topology: v5e:2x2
jax: 0.10.0
libtpu: 0.0.40
codegen_flags: <defaults>
</compile_context>

<pallas_src>
import math

import jax
import jax.numpy as jnp
from jax.experimental import pallas as pl
from jax.experimental.pallas import tpu as pltpu

_HALF_LOG_2PI = 0.5 * math.log(2.0 * math.pi)

_LANE = 128
_TARGET_TILE_BYTES = 4 << 20   # ~4 MiB of (VMEM-padded) z per grid step; x2 double-buffered.
_MIN_GOOD_TB = 256             # prefer at least this many batch rows before splitting M.


def _round_up(x: int, m: int) -> int:
    return ((x + m - 1) // m) * m


def _sublane_multiple(itemsize: int) -> int:
    # f32 -> 8, bf16 -> 16, int8/fp8 -> 32 (sub-32-bit dtypes pack along sublanes).
    return max(8, 32 // max(1, itemsize))


def _choose_tiles(B: int, M: int, itemsize: int):
    sublane = _sublane_multiple(itemsize)

    # ---- M (reduction / "arbitrary") tile ----
    # Split M only when a reasonably tall full-M tile would blow the byte target
    # AND M splits evenly into multiples of 128 lanes.  A partial minor tile
    # would feed unspecified lanes into the row sum, so it is never allowed.
    tm = M
    if M % _LANE == 0 and M * itemsize * _MIN_GOOD_TB > _TARGET_TILE_BYTES:
        tm = _LANE
        cand = _LANE
        while cand <= M:
            if M % cand == 0 and cand * itemsize * _MIN_GOOD_TB <= _TARGET_TILE_BYTES:
                tm = cand
            cand += _LANE

    # ---- B (batch / "parallel") tile ----
    # Size from bytes using the VMEM-padded row width (minor dim pads to 128 lanes).
    padded_row_bytes = _round_up(tm, _LANE) * itemsize
    tb = max(sublane, (_TARGET_TILE_BYTES // padded_row_bytes) // sublane * sublane)
    tb = min(tb, _round_up(B, sublane))
    # Keep >= 2 grid steps over the batch so both v7x TensorCores get work.
    if B > sublane:
        tb = min(tb, _round_up(pl.cdiv(B, 2), sublane))
    tb = max(tb, sublane)
    # Large tiles: round to a 128-multiple so the lane-dense store is unmasked.
    if tb >= 2 * _LANE:
        tb = (tb // _LANE) * _LANE
    return tb, tm, sublane


def _gaussian_prior_logprob_kernel(log_norm_ref, mean_ref, inv_std_ref, z_ref,
                                   out_ref, acc_ref):
    # Grid: (batch tiles ["parallel"], M tiles ["arbitrary", reduction, last]).
    # log_norm_ref : SMEM (1,) f32  (= -sum(log std) - 0.5*M*log(2*pi))
    # mean_ref     : VMEM (1, tm) f32   block index (0, k)
    # inv_std_ref  : VMEM (1, tm) f32   block index (0, k)
    # z_ref        : VMEM (tb, tm)      block index (i, k)
    # out_ref      : VMEM (1, 1, tb) f32, resident across the M axis
    # acc_ref      : VMEM (tb, 1) f32 scratch accumulator
    k = pl.program_id(1)

    @pl.when(k == 0)
    def _init():
        acc_ref[...] = jnp.zeros_like(acc_ref)

    z = z_ref[...].astype(jnp.float32)                         # (tb, tm)
    diff = (z - mean_ref[...]) * inv_std_ref[...]              # (tb, tm) VPU
    acc_ref[...] += jnp.sum(diff * diff, axis=-1, keepdims=True)  # (tb, 1)

    @pl.when(k == pl.num_programs(1) - 1)
    def _finalize():
        res = -0.5 * acc_ref[...] + log_norm_ref[0]            # (tb, 1)
        # Lane-dense writeback: one sublane->lane transpose (XLU) per batch
        # tile, then a dense (1, 1, tb) store instead of tb/8 masked stores.
        out_ref[...] = jnp.transpose(res)[None]                # (1, 1, tb)
        # TODO(synk): for very small M the lane reduce + this transpose can
        # rival the tile DMA; an MXU row-sum (sq @ ones) would offload it but
        # is kept out to preserve exact f32 accumulation.


class GaussianPrior:
    """JAX/Pallas port of the PyTorch GaussianPrior module.

    Parameters are mean = zeros(M), std = ones(M) (frozen in torch ->
    constants here, but the kernel keeps the general mean/std path so loaded
    parameters would also work).  forward() in torch returns a Distribution
    object; the kernel exposes that distribution's hot path, log_prob(z).
    """

    def __init__(self, M: int):
        self.M = M
        self.mean = jnp.zeros((1, M), dtype=jnp.float32)
        self.std = jnp.ones((1, M), dtype=jnp.float32)
        # Frozen parameters -> fold derived constants once, outside the kernel.
        self.inv_std = (1.0 / self.std).astype(jnp.float32)
        self.log_norm_sum = jnp.reshape(
            -jnp.sum(jnp.log(self.std)) - M * _HALF_LOG_2PI, (1,)
        ).astype(jnp.float32)

    def log_prob(self, z: jnp.ndarray, *, block_b: int | None = None) -> jnp.ndarray:
        # z: (B, M) -> (B,)
        B, M = z.shape
        assert M == self.M
        itemsize = jnp.dtype(z.dtype).itemsize

        tb, tm, sublane = _choose_tiles(B, M, itemsize)
        if block_b is not None:  # explicit override (tests / tuning)
            tb = max(sublane, _round_up(min(block_b, _round_up(B, sublane)), sublane))

        nb = pl.cdiv(B, tb)   # pad-free ragged grid: last tile reads OOB rows
        nk = pl.cdiv(M, tm)   # == M // tm (tm == M or tm | M by construction)

        # Rough VMEM footprint (lane-padded): double-buffered z + f32 accumulator
        # + small params/output.  Only override the scoped limit when needed.
        est_vmem = (2 * tb * _round_up(tm, _LANE) * itemsize
                    + tb * _LANE * 4
                    + 8 * _round_up(tm, _LANE) * 4
                    + 2 * 8 * tb * 4)
        cp_kwargs = dict(dimension_semantics=("parallel", "arbitrary"))
        if est_vmem > (24 << 20):
            cp_kwargs["vmem_limit_bytes"] = int(est_vmem * 1.25)

        out = pl.pallas_call(
            _gaussian_prior_logprob_kernel,
            out_shape=jax.ShapeDtypeStruct((nb, 1, tb), jnp.float32),
            grid_spec=pltpu.PrefetchScalarGridSpec(
                num_scalar_prefetch=0,
                grid=(nb, nk),
                in_specs=[
                    pl.BlockSpec(memory_space=pltpu.MemorySpace.SMEM),     # log_norm_sum
                    pl.BlockSpec((1, tm), lambda i, k: (0, k)),            # mean
                    pl.BlockSpec((1, tm), lambda i, k: (0, k)),            # inv_std
                    pl.BlockSpec((tb, tm), lambda i, k: (i, k)),           # z tiles
                ],
                out_specs=pl.BlockSpec((1, 1, tb), lambda i, k: (i, 0, 0)),
                scratch_shapes=[pltpu.VMEM((tb, 1), jnp.float32)],
            ),
            compiler_params=pltpu.CompilerParams(**cp_kwargs),
        )(self.log_norm_sum, self.mean, self.inv_std, z)

        # Flat (nb*tb,) maps row-major onto z rows; drop the OOB tail.
        return out.reshape(-1)[:B]

    # TODO(synk): forward() in torch returns a Distribution object; sampling
    # (prior.sample) could also be done in-kernel via pltpu.prng_* if needed.


def _reference_log_prob(mean, std, z):
    # Pure-JAX reference matching td.Independent(td.Normal(mean, std), 1).log_prob(z)
    var = std ** 2
    lp = -((z - mean) ** 2) / (2.0 * var) - jnp.log(std) - _HALF_LOG_2PI
    return jnp.sum(lp, axis=-1)


if __name__ == "__main__":
    M = 32
    prior = GaussianPrior(M)

    key = jax.random.PRNGKey(0)
    k_small, k_big = jax.random.split(key)

    # Case 1: tiny batch, single tile.
    z_small = jax.random.normal(k_small, (8, M), dtype=jnp.float32)
    lp_small = prior.log_prob(z_small)
    jax.block_until_ready(lp_small)
    ref_small = _reference_log_prob(prior.mean, prior.std, z_small)
    assert lp_small.shape == (8,)
    assert jnp.allclose(lp_small, ref_small, atol=1e-4, rtol=1e-4), (lp_small, ref_small)

    # Case 2: ragged batch (B=40) with a forced 16-row tile -> 3-step pad-free
    # grid whose last tile reads OOB rows that are sliced off.
    z_big = jax.random.normal(k_big, (40, M), dtype=jnp.float32)
    lp_big = prior.log_prob(z_big, block_b=16)
    jax.block_until_ready(lp_big)
    ref_big = _reference_log_prob(prior.mean, prior.std, z_big)
    assert lp_big.shape == (40,)
    assert jnp.allclose(lp_big, ref_big, atol=1e-4, rtol=1e-4), (lp_big, ref_big)

    # Case 3: auto-tiled path (exercises byte-targeted sizing + >=2-step cap).
    lp_auto = prior.log_prob(z_big)
    jax.block_until_ready(lp_auto)
    assert lp_auto.shape == (40,)
    assert jnp.allclose(lp_auto, ref_big, atol=1e-4, rtol=1e-4), (lp_auto, ref_big)

    print("KERNEL_OK")
</pallas_src>

<mosaic_0001>
module attributes {stable_mosaic.version = 11 : i64} {
  func.func @_gaussian_prior_logprob_kernel(%arg0: i32, %arg1: i32, %arg2: memref<1xf32, #tpu.memory_space<smem>>, %arg3: memref<1x32xf32, #tpu.memory_space<vmem>>, %arg4: memref<1x32xf32, #tpu.memory_space<vmem>>, %arg5: memref<8x32xf32, #tpu.memory_space<vmem>>, %arg6: memref<1x1x8xf32, #tpu.memory_space<vmem>>, %arg7: memref<8x1xf32, #tpu.memory_space<vmem>>) attributes {dimension_semantics = [#tpu.dimension_semantics<parallel>, #tpu.dimension_semantics<arbitrary>], iteration_bounds = array<i64: 1, 1>, scalar_prefetch = 0 : i64, scratch_operands = 1 : i64, tpu.core_type = #tpu.core_type<tc>, window_params = [{transform_indices = @transform_0, window_bounds = array<i64: 1>}, {transform_indices = @transform_1, window_bounds = array<i64: 1, 32>}, {transform_indices = @transform_2, window_bounds = array<i64: 1, 32>}, {transform_indices = @transform_3, window_bounds = array<i64: 8, 32>}, {transform_indices = @transform_4, window_bounds = array<i64: 1, 1, 8>}]} {
    %c0_i32 = arith.constant 0 : i32
    %0 = arith.cmpi eq, %arg1, %c0_i32 : i32
    %1 = arith.extui %0 : i1 to i32
    %c0_i32_0 = arith.constant 0 : i32
    %2 = arith.cmpi ne, %1, %c0_i32_0 : i32
    scf.if %2 {
      %cst_12 = arith.constant 0.000000e+00 : f32
      %19 = vector.broadcast %cst_12 : f32 to vector<8x1xf32>
      %c0_13 = arith.constant 0 : index
      %c0_14 = arith.constant 0 : index
      %20 = vector.load %arg7[%c0_13, %c0_14] : memref<8x1xf32, #tpu.memory_space<vmem>>, vector<8x1xf32>
      tpu.vector_store %arg7[%c0_13, %c0_14], %19 {strides = array<i32>} : memref<8x1xf32, #tpu.memory_space<vmem>>, vector<8x1xf32>,
    } else {
    }
    %c0 = arith.constant 0 : index
    %c0_1 = arith.constant 0 : index
    %3 = vector.load %arg5[%c0, %c0_1] : memref<8x32xf32, #tpu.memory_space<vmem>>, vector<8x32xf32>
    %c0_2 = arith.constant 0 : index
    %c0_3 = arith.constant 0 : index
    %4 = vector.load %arg3[%c0_2, %c0_3] : memref<1x32xf32, #tpu.memory_space<vmem>>, vector<1x32xf32>
    %5 = vector.broadcast %4 : vector<1x32xf32> to vector<8x32xf32>
    %6 = arith.subf %3, %5 : vector<8x32xf32>
    %c0_4 = arith.constant 0 : index
    %c0_5 = arith.constant 0 : index
    %7 = vector.load %arg4[%c0_4, %c0_5] : memref<1x32xf32, #tpu.memory_space<vmem>>, vector<1x32xf32>
    %8 = vector.broadcast %7 : vector<1x32xf32> to vector<8x32xf32>
    %9 = arith.mulf %6, %8 : vector<8x32xf32>
    %c0_6 = arith.constant 0 : index
    %c0_7 = arith.constant 0 : index
    %10 = vector.load %arg7[%c0_6, %c0_7] : memref<8x1xf32, #tpu.memory_space<vmem>>, vector<8x1xf32>
    %11 = arith.mulf %9, %9 : vector<8x32xf32>
    %cst = arith.constant dense<0.000000e+00> : vector<8xf32>
    %12 = vector.multi_reduction <add>, %11, %cst [1] : vector<8x32xf32> to vector<8xf32>
    %13 = vector.shape_cast %12 : vector<8xf32> to vector<8x1xf32>
    %14 = arith.addf %10, %13 : vector<8x1xf32>
    %c0_8 = arith.constant 0 : index
    %c0_9 = arith.constant 0 : index
    %15 = vector.load %arg7[%c0_8, %c0_9] : memref<8x1xf32, #tpu.memory_space<vmem>>, vector<8x1xf32>
    tpu.vector_store %arg7[%c0_8, %c0_9], %14 {strides = array<i32>} : memref<8x1xf32, #tpu.memory_space<vmem>>, vector<8x1xf32>,
    %c0_i32_10 = arith.constant 0 : i32
    %16 = arith.cmpi eq, %arg1, %c0_i32_10 : i32
    %17 = arith.extui %16 : i1 to i32
    %c0_i32_11 = arith.constant 0 : i32
    %18 = arith.cmpi ne, %17, %c0_i32_11 : i32
    scf.if %18 {
      %c0_12 = arith.constant 0 : index
      %c0_13 = arith.constant 0 : index
      %19 = vector.load %arg7[%c0_12, %c0_13] : memref<8x1xf32, #tpu.memory_space<vmem>>, vector<8x1xf32>
      %cst_14 = arith.constant -5.000000e-01 : f32
      %20 = vector.broadcast %cst_14 : f32 to vector<8x1xf32>
      %21 = arith.mulf %20, %19 : vector<8x1xf32>
      %c0_15 = arith.constant 0 : index
      %22 = memref.load %arg2[%c0_15] : memref<1xf32, #tpu.memory_space<smem>>
      %23 = vector.broadcast %22 : f32 to vector<8x1xf32>
      %24 = arith.addf %21, %23 : vector<8x1xf32>
      %25 = tpu.transpose %24, [1, 0] : vector<8x1xf32> -> vector<1x8xf32>
      %26 = vector.shape_cast %25 : vector<1x8xf32> to vector<1x1x8xf32>
      %c0_16 = arith.constant 0 : index
      %c0_17 = arith.constant 0 : index
      %c0_18 = arith.constant 0 : index
      %27 = vector.load %arg6[%c0_16, %c0_17, %c0_18] : memref<1x1x8xf32, #tpu.memory_space<vmem>>, vector<1x1x8xf32>
      tpu.vector_store %arg6[%c0_16, %c0_17, %c0_18], %26 {strides = array<i32>} : memref<1x1x8xf32, #tpu.memory_space<vmem>>, vector<1x1x8xf32>,
    } else {
    }
    return
  }
  func.func @transform_0(%arg0: i32, %arg1: i32) -> i32 {
    %c0_i32 = arith.constant 0 : i32
    %c0_i32_0 = arith.constant 0 : i32
    return %c0_i32 : i32
  }
  func.func @transform_1(%arg0: i32, %arg1: i32) -> (i32, i32) {
    %c0_i32 = arith.constant 0 : i32
    %c0_i32_0 = arith.constant 0 : i32
    return %c0_i32, %arg1 : i32, i32
  }
  func.func @transform_2(%arg0: i32, %arg1: i32) -> (i32, i32) {
    %c0_i32 = arith.constant 0 : i32
    %c0_i32_0 = arith.constant 0 : i32
    return %c0_i32, %arg1 : i32, i32
  }
  func.func @transform_3(%arg0: i32, %arg1: i32) -> (i32, i32) {
    %c0_i32 = arith.constant 0 : i32
    return %arg0, %arg1 : i32, i32
  }
  func.func @transform_4(%arg0: i32, %arg1: i32) -> (i32, i32, i32) {
    %c0_i32 = arith.constant 0 : i32
    %c0_i32_0 = arith.constant 0 : i32
    %c0_i32_1 = arith.constant 0 : i32
    return %arg0, %c0_i32, %c0_i32_0 : i32, i32, i32
  }
}

</mosaic_0001>

<llo_original>
// kernel: tpu_custom_call.1
$region0: #{tpu_custom_call.1}
  #allocation0 [shape = 'u32[]', space=smem, size = 0x4, offset = 0x4, fixed_abs, tag = 'smem constant byte address 0x4 - core index']
  #allocation1 [shape = 'u32[72,128]{1,0:T(1,128)}', space=vmem, size = 0x9000, scoped, tag = 'internal scratch']
  #allocation2 [shape = 'f32[8,1]{1,0:T(8,128)}', space=vmem, size = 0x1000, scoped, tag = 'scratch operand']
  #allocation3 [shape = 'f32[1]{0:T(128)S(6)}', space=smem, size = 0x200, scoped, tag = 'scoped memory for tpu_custom_call.1']
  %s0 = inlined_call_operand.<no memory space> [shape: f32[1], index: 0, kind: input, shape index: {}]
  %s1 = inlined_call_operand.vmem [shape: f32[1,32], index: 1, kind: input, shape index: {}]
  %s2 = inlined_call_operand.vmem [shape: f32[1,32], index: 2, kind: input, shape index: {}]
  %s3 = inlined_call_operand.hbm [shape: f32[8,32], index: 3, kind: input, shape index: {}]
  %s4 = inlined_call_operand.hbm [shape: f32[1,1,8], index: 4, kind: output, shape index: {}]
  %s5 = sld [smem:[#allocation0]]
  $region38: #{tpu_custom_call.1} parent=0
    _
  %s7 = ssub.s32 1, %s5
  %s8 = scalar_select 0, %s7, %s5
  %9 = sst [smem:[#allocation3]] %s0
  $region1: #{tpu_custom_call.1} parent=0
    #allocation4 [shape = 'u8[4096]{0}', space=vmem, size = 0x1000, scoped, tag = 'input window, operand 3, single buffered']
    #allocation5 [shape = 's32[1]{0}', space=sflag, size = 0x4, scoped, tag = 'scoped memory for tpu_custom_call.1']
    #allocation6 [shape = 's32[1]{0}', space=sflag, size = 0x4, scoped, tag = 'scoped memory for tpu_custom_call.1']
    #allocation7 [shape = 'u8[512]{0}', space=vmem, size = 0x400, scoped, tag = 'output window, operand 0, single buffered']
    %10 = vsyncpa [#allocation5], 0
    %11 = vsyncpa [#allocation6], 0
    // Predicated region
    $region2: #{tpu_custom_call.1} parent=1 // pred_check
      _
    $region3: #{tpu_custom_call.1} parent=1 // pred_check_branch
      %13 = sbr.rel (0) target = $region5
    $region4: #{tpu_custom_call.1} parent=1 // pred_region
      _
    $region5: #{tpu_custom_call.1} parent=1 // pred_fallthru
      _
    // Predicated region
    $region6: #{tpu_custom_call.1} parent=1 // pred_check
      _
    $region7: #{tpu_custom_call.1} parent=1 // pred_check_branch
      %15 = sbr.rel (0) target = $region9
    $region8: #{tpu_custom_call.1} parent=1 // pred_region
      _
    $region9: #{tpu_custom_call.1} parent=1 // pred_fallthru
      _
    // Predicated region
    $region10: #{tpu_custom_call.1} parent=1 // pred_check
      _
    $region11: #{tpu_custom_call.1} parent=1 // pred_check_branch
      %17 = sbr.rel (0) target = $region13
    $region12: #{tpu_custom_call.1} parent=1 // pred_region
      _
    $region13: #{tpu_custom_call.1} parent=1 // pred_fallthru
      _
    // Predicated region
    $region14: #{tpu_custom_call.1} parent=1 // pred_check
      _
    $region15: #{tpu_custom_call.1} parent=1 // pred_check_branch
      %19 = sbr.rel (0) target = $region17
    $region16: #{tpu_custom_call.1} parent=1 // pred_region
      %21 = vsyncadd [#allocation5], 0
      %s23 = sshll.u32 %s3, 4
      %s24 = int_to_ptr.hbm [resolvable:$true] %s23
      %s25 = sshll.u32 [#allocation4], 4
      %s26 = int_to_ptr.vmem [resolvable:$true] %s25
      %28 = dma.hbm_to_vmem [thread:$0]  %s24, 128, %s26, [#allocation5]
    $region17: #{tpu_custom_call.1} parent=1 // pred_fallthru
      _
    // Predicated region
    $region18: #{tpu_custom_call.1} parent=1 // pred_check
      _
    $region19: #{tpu_custom_call.1} parent=1 // pred_check_branch
      %30 = sbr.rel (0) target = $region21
    $region20: #{tpu_custom_call.1} parent=1 // pred_region
      %32 = dma.done [#allocation5], 128
    $region21: #{tpu_custom_call.1} parent=1 // pred_fallthru
      _
    %p33 = scmp.eq.s32.totalorder 0, 0
    // Predicated region
    $region22: #{tpu_custom_call.1} parent=1 // pred_check
      %p34 = pneg %p33
    $region23: #{tpu_custom_call.1} parent=1 // pred_check_branch
      %36 = sbr.rel (%p34) target = $region25
    $region24: #{tpu_custom_call.1} parent=1 // pred_region
      %vm37 = vcmask 7168
      %38 = vst.msk [vmem:[#allocation2] sm:$0xff] %vm37, 0.0
    $region25: #{tpu_custom_call.1} parent=1 // pred_fallthru
      _
    %v39 = vld [vmem:[#allocation4] sm:$0xff]
    %v40 = vld [vmem:[%s1] sm:$0x1]
    %v42 = vperm.slane %v40, 0
    %v44 = vsub.f32 %v39, %v42
    %v45 = vld [vmem:[%s2] sm:$0x1]
    %v47 = vperm.slane %v45, 0
    %v49 = vmul.f32 %v44, %v47
    %v50 = vld [vmem:[#allocation2] sm:$0xff]
    %v51 = vmul.f32 %v49, %v49
    %vm52 = vcmask 261120
    %v53 = vsel %vm52, %v51, 0.0
    %54 = vadd.xlane.f32.xlu0 %v53
    %v55 = vpop.xlane.xlu0 %54
    %v56 = vadd.f32 %v50, %v55
    %vm57 = vcmask 7168
    %58 = vst.msk [vmem:[#allocation2] sm:$0xff] %vm57, %v56
    // Predicated region
    $region26: #{tpu_custom_call.1} parent=1 // pred_check
      %p59 = pneg %p33
    $region27: #{tpu_custom_call.1} parent=1 // pred_check_branch
      %61 = sbr.rel (%p59) target = $region29
    $region28: #{tpu_custom_call.1} parent=1 // pred_region
      %v62 = vld [vmem:[#allocation2] sm:$0xff]
      %v63 = vmul.f32 %v62, -0.5
      %s64 = sld [smem:[#allocation3]]
      %v65 = vstv %s64
      %v66 = vadd.f32 %v63, %v65
      %67 = vxpose.xlu0.b32.start [1/16] %v66, 128
      %68 = vxpose.xlu0.b32.cont [2/16] 0.0, 128
      %69 = vxpose.xlu0.b32.cont [3/16] 0.0, 128
      %70 = vxpose.xlu0.b32.cont [4/16] 0.0, 128
      %71 = vxpose.xlu0.b32.cont [5/16] 0.0, 128
      %72 = vxpose.xlu0.b32.cont [6/16] 0.0, 128
      %73 = vxpose.xlu0.b32.cont [7/16] 0.0, 128
      %74 = vxpose.xlu0.b32.cont [8/16] 0.0, 128
      %75 = vxpose.xlu0.b32.cont [9/16] 0.0, 128
      %76 = vxpose.xlu0.b32.cont [10/16] 0.0, 128
      %77 = vxpose.xlu0.b32.cont [11/16] 0.0, 128
      %78 = vxpose.xlu0.b32.cont [12/16] 0.0, 128
      %79 = vxpose.xlu0.b32.cont [13/16] 0.0, 128
      %80 = vxpose.xlu0.b32.cont [14/16] 0.0, 128
      %81 = vxpose.xlu0.b32.cont [15/16] 0.0, 128
      %82 = vxpose.xlu0.b32.end [16/16] 0.0, 128
      %v83 = vpop.trf.xlu0
      %v84 = vpop.trf.xlu0
      %v85 = vpop.trf.xlu0
      %v86 = vpop.trf.xlu0
      %v87 = vpop.trf.xlu0
      %v88 = vpop.trf.xlu0
      %v89 = vpop.trf.xlu0
      %v90 = vpop.trf.xlu0
      %v91 = vpop.trf.xlu0
      %v92 = vpop.trf.xlu0
      %v93 = vpop.trf.xlu0
      %v94 = vpop.trf.xlu0
      %v95 = vpop.trf.xlu0
      %v96 = vpop.trf.xlu0
      %v97 = vpop.trf.xlu0
      %v98 = vpop.trf.xlu0
      %vm99 = vcmask 57344
      %100 = vst.msk [vmem:[#allocation7] sm:$0x1] %vm99, %v83
    $region29: #{tpu_custom_call.1} parent=1 // pred_fallthru
      _
    // Predicated region
    $region30: #{tpu_custom_call.1} parent=1 // pred_check
      _
    $region31: #{tpu_custom_call.1} parent=1 // pred_check_branch
      %102 = sbr.rel (0) target = $region33
    $region32: #{tpu_custom_call.1} parent=1 // pred_region
      %104 = vsyncadd [#allocation6], 0
      %s106 = sshll.u32 [#allocation7], 4
      %s107 = int_to_ptr.vmem [resolvable:$true] %s106
      %s108 = sshll.u32 %s4, 4
      %s109 = int_to_ptr.hbm [resolvable:$true] %s108
      %111 = dma.vmem_to_hbm [thread:$0]  %s107, 16, %s109, [#allocation6]
    $region33: #{tpu_custom_call.1} parent=1 // pred_fallthru
      _
    // Predicated region
    $region34: #{tpu_custom_call.1} parent=1 // pred_check
      _
    $region35: #{tpu_custom_call.1} parent=1 // pred_check_branch
      %113 = sbr.rel (0) target = $region37
    $region36: #{tpu_custom_call.1} parent=1 // pred_region
      %115 = dma.done [#allocation6], 16
    $region37: #{tpu_custom_call.1} parent=1 // pred_fallthru
      _
    %116 = vsyncpa [#allocation5], 1
    %117 = vsyncpa [#allocation6], 1

</llo_original>
